<compile_context>
chip_gen: v7x
topology: tpu7x:2x2x1
jax: 0.10.0
libtpu: 0.0.40
codegen_flags: <defaults>
</compile_context>

<pallas_src>
import jax
import jax.numpy as jnp
from jax.experimental import pallas as pl
from jax.experimental.pallas import tpu as pltpu


def _concat_dma_kernel(a_ref, b_ref, c_ref, o_ref, sems):
    # a/b/c: (N, CHW) in HBM; o: (N, 3*CHW) in HBM. Each input is one
    # rectangular column slab of the output -> pure DMA, no compute.
    chw = a_ref.shape[1]
    cp0 = pltpu.make_async_copy(a_ref, o_ref.at[:, 0 * chw:1 * chw], sems.at[0])
    cp1 = pltpu.make_async_copy(b_ref, o_ref.at[:, 1 * chw:2 * chw], sems.at[1])
    cp2 = pltpu.make_async_copy(c_ref, o_ref.at[:, 2 * chw:3 * chw], sems.at[2])
    cp0.start()
    cp1.start()
    cp2.start()
    cp0.wait()
    cp1.wait()
    cp2.wait()


def concat_channels(x4, x8, x12):
    """torch.cat((x4, x8, x12), dim=1) for NCHW tensors via Pallas DMA copies."""
    assert x4.shape == x8.shape == x12.shape
    assert x4.dtype == x8.dtype == x12.dtype
    n, c, h, w = x4.shape
    chw = c * h * w

    # Contiguous NCHW -> (N, C*H*W) is a free (metadata-only) reshape; the
    # channel concat becomes a concat along the last, lane-dense axis.
    a2 = x4.reshape(n, chw)
    b2 = x8.reshape(n, chw)
    c2 = x12.reshape(n, chw)

    out2 = pl.pallas_call(
        _concat_dma_kernel,
        out_shape=jax.ShapeDtypeStruct((n, 3 * chw), x4.dtype),
        in_specs=[
            pl.BlockSpec(memory_space=pl.ANY),
            pl.BlockSpec(memory_space=pl.ANY),
            pl.BlockSpec(memory_space=pl.ANY),
        ],
        out_specs=pl.BlockSpec(memory_space=pl.ANY),
        scratch_shapes=[pltpu.SemaphoreType.DMA((3,))],
        compiler_params=pltpu.CompilerParams(has_side_effects=True),
    )(a2, b2, c2)

    return out2.reshape(n, 3 * c, h, w)


if __name__ == "__main__":
    # Shapes from the original module: three (1, 1, 224, 224) f32 tensors.
    # NOTE: for tensors this small, plain jnp.concatenate (or fusing the concat
    # into the consumer) is strictly faster than any kernel launch; the Pallas
    # path is shown to satisfy the spec and scales to real shapes unchanged.
    key = jax.random.PRNGKey(0)
    k4, k8, k12 = jax.random.split(key, 3)
    N, C, H, W = 1, 1, 224, 224
    x4 = jax.random.normal(k4, (N, C, H, W), dtype=jnp.float32)
    x8 = jax.random.normal(k8, (N, C, H, W), dtype=jnp.float32)
    x12 = jax.random.normal(k12, (N, C, H, W), dtype=jnp.float32)

    out = jax.block_until_ready(concat_channels(x4, x8, x12))

    ref = jnp.concatenate((x4, x8, x12), axis=1)
    assert out.shape == (N, 3 * C, H, W)
    assert jnp.array_equal(out, ref)
    print("KERNEL_OK")
</pallas_src>

<mosaic_0001>
module attributes {stable_mosaic.version = 11 : i64} {
  func.func @_concat_dma_kernel(%arg0: memref<1x50176xf32, #tpu.memory_space<any>>, %arg1: memref<1x50176xf32, #tpu.memory_space<any>>, %arg2: memref<1x50176xf32, #tpu.memory_space<any>>, %arg3: memref<1x150528xf32, #tpu.memory_space<any>>, %arg4: memref<3x!tpu.dma_semaphore, #tpu.memory_space<semaphore_mem>>) attributes {dimension_semantics = [], scalar_prefetch = 0 : i64, scratch_operands = 1 : i64, tpu.core_type = #tpu.core_type<tc>} {
    %c0_i32 = arith.constant 0 : i32
    %c0_i32_0 = arith.constant 0 : i32
    %c0_i32_1 = arith.constant 0 : i32
    %0 = tpu.memref_slice %arg3[%c0_i32_0, %c0_i32_1] : memref<1x150528xf32, #tpu.memory_space<any>> -> memref<1x50176xf32, #tpu.memory_space<any>>
    %1 = tpu.memref_slice %arg4[%c0_i32] : memref<3x!tpu.dma_semaphore, #tpu.memory_space<semaphore_mem>> -> memref<1x!tpu.dma_semaphore, #tpu.memory_space<semaphore_mem>>
    %2 = tpu.memref_squeeze %1 : memref<1x!tpu.dma_semaphore, #tpu.memory_space<semaphore_mem>> -> memref<!tpu.dma_semaphore, #tpu.memory_space<semaphore_mem>>
    tpu.enqueue_dma source(%arg0 : memref<1x50176xf32, #tpu.memory_space<any>>) target(%0 : memref<1x50176xf32, #tpu.memory_space<any>>) target_semaphore(%2 : memref<!tpu.dma_semaphore, #tpu.memory_space<semaphore_mem>>)
    %c1_i32 = arith.constant 1 : i32
    %c0_i32_2 = arith.constant 0 : i32
    %c50176_i32 = arith.constant 50176 : i32
    %3 = tpu.memref_slice %arg3[%c0_i32_2, %c50176_i32] : memref<1x150528xf32, #tpu.memory_space<any>> -> memref<1x50176xf32, #tpu.memory_space<any>>
    %4 = tpu.memref_slice %arg4[%c1_i32] : memref<3x!tpu.dma_semaphore, #tpu.memory_space<semaphore_mem>> -> memref<1x!tpu.dma_semaphore, #tpu.memory_space<semaphore_mem>>
    %5 = tpu.memref_squeeze %4 : memref<1x!tpu.dma_semaphore, #tpu.memory_space<semaphore_mem>> -> memref<!tpu.dma_semaphore, #tpu.memory_space<semaphore_mem>>
    tpu.enqueue_dma source(%arg1 : memref<1x50176xf32, #tpu.memory_space<any>>) target(%3 : memref<1x50176xf32, #tpu.memory_space<any>>) target_semaphore(%5 : memref<!tpu.dma_semaphore, #tpu.memory_space<semaphore_mem>>)
    %c2_i32 = arith.constant 2 : i32
    %c0_i32_3 = arith.constant 0 : i32
    %c100352_i32 = arith.constant 100352 : i32
    %6 = tpu.memref_slice %arg3[%c0_i32_3, %c100352_i32] : memref<1x150528xf32, #tpu.memory_space<any>> -> memref<1x50176xf32, #tpu.memory_space<any>>
    %7 = tpu.memref_slice %arg4[%c2_i32] : memref<3x!tpu.dma_semaphore, #tpu.memory_space<semaphore_mem>> -> memref<1x!tpu.dma_semaphore, #tpu.memory_space<semaphore_mem>>
    %8 = tpu.memref_squeeze %7 : memref<1x!tpu.dma_semaphore, #tpu.memory_space<semaphore_mem>> -> memref<!tpu.dma_semaphore, #tpu.memory_space<semaphore_mem>>
    tpu.enqueue_dma source(%arg2 : memref<1x50176xf32, #tpu.memory_space<any>>) target(%6 : memref<1x50176xf32, #tpu.memory_space<any>>) target_semaphore(%8 : memref<!tpu.dma_semaphore, #tpu.memory_space<semaphore_mem>>)
    %c0_i32_4 = arith.constant 0 : i32
    %c0_i32_5 = arith.constant 0 : i32
    %c0_i32_6 = arith.constant 0 : i32
    %9 = tpu.memref_slice %arg3[%c0_i32_5, %c0_i32_6] : memref<1x150528xf32, #tpu.memory_space<any>> -> memref<1x50176xf32, #tpu.memory_space<any>>
    %10 = tpu.memref_slice %arg4[%c0_i32_4] : memref<3x!tpu.dma_semaphore, #tpu.memory_space<semaphore_mem>> -> memref<1x!tpu.dma_semaphore, #tpu.memory_space<semaphore_mem>>
    %11 = tpu.memref_squeeze %10 : memref<1x!tpu.dma_semaphore, #tpu.memory_space<semaphore_mem>> -> memref<!tpu.dma_semaphore, #tpu.memory_space<semaphore_mem>>
    tpu.wait_dma2 semaphore(%11 : memref<!tpu.dma_semaphore, #tpu.memory_space<semaphore_mem>>) src(%arg0 : memref<1x50176xf32, #tpu.memory_space<any>>) dst(%9 : memref<1x50176xf32, #tpu.memory_space<any>>)
    %c1_i32_7 = arith.constant 1 : i32
    %c0_i32_8 = arith.constant 0 : i32
    %c50176_i32_9 = arith.constant 50176 : i32
    %12 = tpu.memref_slice %arg3[%c0_i32_8, %c50176_i32_9] : memref<1x150528xf32, #tpu.memory_space<any>> -> memref<1x50176xf32, #tpu.memory_space<any>>
    %13 = tpu.memref_slice %arg4[%c1_i32_7] : memref<3x!tpu.dma_semaphore, #tpu.memory_space<semaphore_mem>> -> memref<1x!tpu.dma_semaphore, #tpu.memory_space<semaphore_mem>>
    %14 = tpu.memref_squeeze %13 : memref<1x!tpu.dma_semaphore, #tpu.memory_space<semaphore_mem>> -> memref<!tpu.dma_semaphore, #tpu.memory_space<semaphore_mem>>
    tpu.wait_dma2 semaphore(%14 : memref<!tpu.dma_semaphore, #tpu.memory_space<semaphore_mem>>) src(%arg1 : memref<1x50176xf32, #tpu.memory_space<any>>) dst(%12 : memref<1x50176xf32, #tpu.memory_space<any>>)
    %c2_i32_10 = arith.constant 2 : i32
    %c0_i32_11 = arith.constant 0 : i32
    %c100352_i32_12 = arith.constant 100352 : i32
    %15 = tpu.memref_slice %arg3[%c0_i32_11, %c100352_i32_12] : memref<1x150528xf32, #tpu.memory_space<any>> -> memref<1x50176xf32, #tpu.memory_space<any>>
    %16 = tpu.memref_slice %arg4[%c2_i32_10] : memref<3x!tpu.dma_semaphore, #tpu.memory_space<semaphore_mem>> -> memref<1x!tpu.dma_semaphore, #tpu.memory_space<semaphore_mem>>
    %17 = tpu.memref_squeeze %16 : memref<1x!tpu.dma_semaphore, #tpu.memory_space<semaphore_mem>> -> memref<!tpu.dma_semaphore, #tpu.memory_space<semaphore_mem>>
    tpu.wait_dma2 semaphore(%17 : memref<!tpu.dma_semaphore, #tpu.memory_space<semaphore_mem>>) src(%arg2 : memref<1x50176xf32, #tpu.memory_space<any>>) dst(%15 : memref<1x50176xf32, #tpu.memory_space<any>>)
    return
  }
}

</mosaic_0001>

<llo_original>
// kernel: tpu_custom_call.1
$region0: #{tpu_custom_call.1}
  #allocation0 [shape = 'u32[]', space=smem, size = 0x4, offset = 0x4, fixed_abs, tag = 'smem constant byte address 0x4 - core index']
  #allocation1 [shape = 'u32[144,128]{1,0:T(1,128)}', space=vmem, size = 0x12000, scoped, tag = 'internal scratch']
  #allocation2 [shape = 's32[3]{0}', space=sflag, size = 0xc, scoped, tag = 'scratch operand']
  #allocation3 [shape = 's32[]', space=sflag, size = 0x4, offset = 0, fixed_abs, tag = 'sflag constant byte address 0x0 - dummy sync flag']
  #allocation4 [shape = 'u32[0]{0}', space=smem, size = 0, offset = 0, fixed_abs, tag = 'smem constant byte address 0x0 - null']
  #allocation5 [shape = 's32[]', space=sflag, size = 0x4, offset = 0, fixed_abs, tag = 'sflag constant byte address 0x0 - dummy sync flag']
  #allocation6 [shape = 'u32[0]{0}', space=smem, size = 0, offset = 0, fixed_abs, tag = 'smem constant byte address 0x0 - null']
  #allocation7 [shape = 's32[]', space=sflag, size = 0x4, offset = 0, fixed_abs, tag = 'sflag constant byte address 0x0 - dummy sync flag']
  #allocation8 [shape = 'u32[0]{0}', space=smem, size = 0, offset = 0, fixed_abs, tag = 'smem constant byte address 0x0 - null']
  %s0 = inlined_call_operand.hbm [shape: f32[1,50176], index: 0, kind: input, shape index: {}]
  %s1 = inlined_call_operand.hbm [shape: f32[1,50176], index: 1, kind: input, shape index: {}]
  %s2 = inlined_call_operand.hbm [shape: f32[1,50176], index: 2, kind: input, shape index: {}]
  %s3 = inlined_call_operand.hbm [shape: f32[1,150528], index: 3, kind: output, shape index: {}]
  %s4 = sld [smem:[#allocation0]]
  $region2: #{tpu_custom_call.1} parent=0
    _
  %s6 = ssub.s32 1, %s4
  %s7 = scalar_select 0, %s6, %s4
  %s9 = sshll.u32 1, 14
  %s10 = sxor.u32 4294967295, %s9
  %s13 = sshll.u32 3, 24
  %s14 = sxor.u32 4294967295, %s13
  %s15 = sand.u32 0, %s14
  %s17 = sor.u32 %s15, 0
  %20 = dma.general %s0, 6272, %s3, [#allocation2], [#allocation3], [#allocation4], %s17, 0
  %s21 = scalar_lea.hbm %s3, 6272
  %s22 = scalar_lea.sflag [#allocation2], 1
  %s24 = sshll.u32 1, 14
  %s25 = sxor.u32 4294967295, %s24
  %s28 = sshll.u32 3, 24
  %s29 = sxor.u32 4294967295, %s28
  %s30 = sand.u32 0, %s29
  %s32 = sor.u32 %s30, 0
  %35 = dma.general %s1, 6272, %s21, %s22, [#allocation5], [#allocation6], %s32, 0
  %s36 = scalar_lea.hbm %s3, 12544
  %s37 = scalar_lea.sflag [#allocation2], 2
  %s39 = sshll.u32 1, 14
  %s40 = sxor.u32 4294967295, %s39
  %s43 = sshll.u32 3, 24
  %s44 = sxor.u32 4294967295, %s43
  %s45 = sand.u32 0, %s44
  %s47 = sor.u32 %s45, 0
  %50 = dma.general %s2, 6272, %s36, %s37, [#allocation7], [#allocation8], %s47, 0
  %s51 = smul.u32 1, 392
  %s52 = sshll.u32 %s51, 4
  %53 = dma.done [#allocation2], %s52
  %s54 = sshll.u32 %s51, 4
  %55 = dma.done %s22, %s54
  %s56 = sshll.u32 %s51, 4
  %57 = dma.done %s37, %s56
  %58 = vsyncmov [#allocation2]
  %s59 = vpop.sfrf %58
  %p60 = scmp.eq.s32.totalorder %s59, 0
  %p61 = pneg %p60
  %63 = shalt.err (%p61)
  %s64 = scalar_lea.sflag [#allocation2], 1
  %65 = vsyncmov %s64
  %s66 = vpop.sfrf %65
  %p67 = scmp.eq.s32.totalorder %s66, 0
  %p68 = pneg %p67
  %70 = shalt.err (%p68)
  %s71 = scalar_lea.sflag [#allocation2], 2
  %72 = vsyncmov %s71
  %s73 = vpop.sfrf %72
  %p74 = scmp.eq.s32.totalorder %s73, 0
  %p75 = pneg %p74
  %77 = shalt.err (%p75)

</llo_original>
